<compile_context>
chip_gen: v7x
topology: tpu7x:2x2x1
jax: 0.10.0
libtpu: 0.0.40
codegen_flags: <defaults>
</compile_context>

<pallas_src>
import functools

import jax
import jax.numpy as jnp
from jax.experimental import pallas as pl
from jax.experimental.pallas import tpu as pltpu

LANE = 128  # TPU lane width; logits dim is padded to this for lane-dense stores.


def inverse_model_kernel(
    s_ref,    # (TB, S)    f32   state latent tile
    ns_ref,   # (TB, S)    f32   next-state latent tile
    w1s_ref,  # (S, 128)   bf16  first-layer weights, state half
    w1n_ref,  # (S, 128)   bf16  first-layer weights, next-state half
    b1_ref,   # (1, 128)   f32
    w2_ref,   # (128, 128) bf16
    b2_ref,   # (1, 128)   f32
    w3_ref,   # (128,LANE) bf16  (logits dim zero-padded to LANE)
    b3_ref,   # (1, LANE)  f32   (zero-padded to LANE)
    out_ref,  # (TB, LANE) f32   lane-dense output tile
):
    # Weights arrive in bf16 (half the DMA bytes) and are upcast once per tile;
    # all elementwise math and MXU accumulation are f32.
    w1s = w1s_ref[...].astype(jnp.float32)
    w1n = w1n_ref[...].astype(jnp.float32)
    w2 = w2_ref[...].astype(jnp.float32)
    w3 = w3_ref[...].astype(jnp.float32)

    # Concat elimination: cat([s, ns], -1) @ W1 == s @ W1s + ns @ W1n.
    h1 = (jnp.dot(s_ref[...], w1s, preferred_element_type=jnp.float32)
          + jnp.dot(ns_ref[...], w1n, preferred_element_type=jnp.float32)
          + b1_ref[...])
    h1 = jnp.maximum(h1, 0.0)

    h2 = jnp.dot(h1, w2, preferred_element_type=jnp.float32) + b2_ref[...]
    h2 = jnp.maximum(h2, 0.0)

    logits = jnp.dot(h2, w3, preferred_element_type=jnp.float32) + b3_ref[...]
    out_ref[...] = logits.astype(out_ref.dtype)


def prepare_params(w1, b1, w2, b2, w3, b3):
    """Convert math-layout f32 params into kernel-ready (bf16, lane-padded) params.

    w1: (2S, 128), b1: (128,), w2: (128, 128), b2: (128,), w3: (128, A), b3: (A,)
    Returns (params_tuple, num_actions).
    """
    two_s = w1.shape[0]
    s = two_s // 2
    num_actions = w3.shape[1]
    w1s, w1n = w1[:s], w1[s:]
    w3p = jnp.zeros((w3.shape[0], LANE), jnp.float32).at[:, :num_actions].set(w3)
    b3p = jnp.zeros((LANE,), jnp.float32).at[:num_actions].set(b3)
    params = (
        w1s.astype(jnp.bfloat16),
        w1n.astype(jnp.bfloat16),
        b1.reshape(1, -1).astype(jnp.float32),
        w2.astype(jnp.bfloat16),
        b2.reshape(1, -1).astype(jnp.float32),
        w3p.astype(jnp.bfloat16),
        b3p.reshape(1, -1).astype(jnp.float32),
    )
    return params, num_actions


@functools.partial(jax.jit, static_argnames=("num_actions", "tile_b"))
def inverse_model(state_latent, next_state_latent, params, *, num_actions, tile_b=128):
    """state_latent / next_state_latent: (B, S) f32 -> (B, num_actions) f32 logits."""
    b, s = state_latent.shape
    w1s, w1n, b1, w2, b2, w3p, b3p = params

    # Pad batch up to a multiple of tile_b so the grid tiles evenly.
    n_tiles = pl.cdiv(b, tile_b)
    bp = n_tiles * tile_b
    if bp != b:
        pad = ((0, bp - b), (0, 0))
        state_latent = jnp.pad(state_latent, pad)
        next_state_latent = jnp.pad(next_state_latent, pad)

    row_spec = pl.BlockSpec((tile_b, s), lambda i: (i, 0))

    def resident(shape):
        # Constant block index -> Pallas fetches the weight once and keeps it in VMEM.
        return pl.BlockSpec(shape, lambda i: (0, 0))

    out = pl.pallas_call(
        inverse_model_kernel,
        out_shape=jax.ShapeDtypeStruct((bp, LANE), jnp.float32),
        grid=(n_tiles,),
        in_specs=[
            row_spec, row_spec,
            resident(w1s.shape), resident(w1n.shape), resident(b1.shape),
            resident(w2.shape), resident(b2.shape),
            resident(w3p.shape), resident(b3p.shape),
        ],
        out_specs=pl.BlockSpec((tile_b, LANE), lambda i: (i, 0)),
        compiler_params=pltpu.CompilerParams(dimension_semantics=("parallel",)),
    )(state_latent, next_state_latent, w1s, w1n, b1, w2, b2, w3p, b3p)

    return out[:b, :num_actions]


def inverse_model_ref(state_latent, next_state_latent, w1, b1, w2, b2, w3, b3):
    """Pure-JAX reference mirroring the PyTorch forward exactly."""
    x = jnp.concatenate([state_latent, next_state_latent], axis=-1)
    h1 = jnp.maximum(x @ w1 + b1, 0.0)
    h2 = jnp.maximum(h1 @ w2 + b2, 0.0)
    return h2 @ w3 + b3


if __name__ == "__main__":
    key = jax.random.PRNGKey(0)
    B = 256          # batch of (s, s') pairs (demonstrates the batched grid, 2 tiles)
    S = 64           # state_latent_features
    A = 4            # action_space.n

    ks = jax.random.split(key, 8)
    scale = 0.05
    w1 = jax.random.normal(ks[0], (2 * S, 128), jnp.float32) * scale
    b1 = jax.random.normal(ks[1], (128,), jnp.float32) * scale
    w2 = jax.random.normal(ks[2], (128, 128), jnp.float32) * scale
    b2 = jax.random.normal(ks[3], (128,), jnp.float32) * scale
    w3 = jax.random.normal(ks[4], (128, A), jnp.float32) * scale
    b3 = jax.random.normal(ks[5], (A,), jnp.float32) * scale
    s_lat = jax.random.normal(ks[6], (B, S), jnp.float32)
    ns_lat = jax.random.normal(ks[7], (B, S), jnp.float32)

    params, num_actions = prepare_params(w1, b1, w2, b2, w3, b3)
    out = inverse_model(s_lat, ns_lat, params, num_actions=num_actions, tile_b=128)
    out = jax.block_until_ready(out)
    assert out.shape == (B, A)

    # Tight check: reference using the SAME bf16-rounded weights the kernel sees.
    rw1 = jnp.concatenate([params[0], params[1]], axis=0).astype(jnp.float32)
    rw2 = params[3].astype(jnp.float32)
    rw3 = params[5].astype(jnp.float32)[:, :A]
    rb3 = params[6][0, :A]
    ref_q = inverse_model_ref(s_lat, ns_lat, rw1, b1, rw2, b2, rw3, rb3)
    assert jnp.allclose(out, ref_q, atol=1e-4, rtol=1e-4), "mismatch vs bf16-weight reference"

    # Loose check vs the original f32 weights (only bf16 weight quantization error).
    ref = inverse_model_ref(s_lat, ns_lat, w1, b1, w2, b2, w3, b3)
    assert jnp.allclose(out, ref, atol=3e-2, rtol=3e-2), "mismatch vs f32 reference"

    print("KERNEL_OK")
</pallas_src>

<mosaic_0001>
module attributes {stable_mosaic.version = 11 : i64} {
  func.func @inverse_model_kernel(%arg0: i32, %arg1: memref<128x64xf32, #tpu.memory_space<vmem>>, %arg2: memref<128x64xf32, #tpu.memory_space<vmem>>, %arg3: memref<64x128xbf16, #tpu.memory_space<vmem>>, %arg4: memref<64x128xbf16, #tpu.memory_space<vmem>>, %arg5: memref<1x128xf32, #tpu.memory_space<vmem>>, %arg6: memref<128x128xbf16, #tpu.memory_space<vmem>>, %arg7: memref<1x128xf32, #tpu.memory_space<vmem>>, %arg8: memref<128x128xbf16, #tpu.memory_space<vmem>>, %arg9: memref<1x128xf32, #tpu.memory_space<vmem>>, %arg10: memref<128x128xf32, #tpu.memory_space<vmem>>) attributes {dimension_semantics = [#tpu.dimension_semantics<parallel>], iteration_bounds = array<i64: 2>, scalar_prefetch = 0 : i64, scratch_operands = 0 : i64, tpu.core_type = #tpu.core_type<tc>, window_params = [{transform_indices = @transform_0, window_bounds = array<i64: 128, 64>}, {transform_indices = @transform_1, window_bounds = array<i64: 128, 64>}, {pipeline_mode = #tpu.pipeline_mode<synchronous>, transform_indices = @transform_2, window_bounds = array<i64: 64, 128>}, {pipeline_mode = #tpu.pipeline_mode<synchronous>, transform_indices = @transform_3, window_bounds = array<i64: 64, 128>}, {pipeline_mode = #tpu.pipeline_mode<synchronous>, transform_indices = @transform_4, window_bounds = array<i64: 1, 128>}, {pipeline_mode = #tpu.pipeline_mode<synchronous>, transform_indices = @transform_5, window_bounds = array<i64: 128, 128>}, {pipeline_mode = #tpu.pipeline_mode<synchronous>, transform_indices = @transform_6, window_bounds = array<i64: 1, 128>}, {pipeline_mode = #tpu.pipeline_mode<synchronous>, transform_indices = @transform_7, window_bounds = array<i64: 128, 128>}, {pipeline_mode = #tpu.pipeline_mode<synchronous>, transform_indices = @transform_8, window_bounds = array<i64: 1, 128>}, {transform_indices = @transform_9, window_bounds = array<i64: 128, 128>}]} {
    %c0 = arith.constant 0 : index
    %c0_0 = arith.constant 0 : index
    %0 = vector.load %arg3[%c0, %c0_0] : memref<64x128xbf16, #tpu.memory_space<vmem>>, vector<64x128xbf16>
    %1 = arith.extf %0 : vector<64x128xbf16> to vector<64x128xf32>
    %c0_1 = arith.constant 0 : index
    %c0_2 = arith.constant 0 : index
    %2 = vector.load %arg4[%c0_1, %c0_2] : memref<64x128xbf16, #tpu.memory_space<vmem>>, vector<64x128xbf16>
    %3 = arith.extf %2 : vector<64x128xbf16> to vector<64x128xf32>
    %c0_3 = arith.constant 0 : index
    %c0_4 = arith.constant 0 : index
    %4 = vector.load %arg6[%c0_3, %c0_4] : memref<128x128xbf16, #tpu.memory_space<vmem>>, vector<128x128xbf16>
    %5 = arith.extf %4 : vector<128x128xbf16> to vector<128x128xf32>
    %c0_5 = arith.constant 0 : index
    %c0_6 = arith.constant 0 : index
    %6 = vector.load %arg8[%c0_5, %c0_6] : memref<128x128xbf16, #tpu.memory_space<vmem>>, vector<128x128xbf16>
    %7 = arith.extf %6 : vector<128x128xbf16> to vector<128x128xf32>
    %c0_7 = arith.constant 0 : index
    %c0_8 = arith.constant 0 : index
    %8 = vector.load %arg1[%c0_7, %c0_8] : memref<128x64xf32, #tpu.memory_space<vmem>>, vector<128x64xf32>
    %cst = arith.constant dense<0.000000e+00> : vector<128x128xf32>
    %9 = tpu.matmul %8, %1, %cst {dimension_numbers = #tpu.dot_dimension_numbers<[1], [0], [0], [1], [0, 0, 1, 1], [], []>} : vector<128x64xf32>, vector<64x128xf32>, vector<128x128xf32> -> vector<128x128xf32>
    %c0_9 = arith.constant 0 : index
    %c0_10 = arith.constant 0 : index
    %10 = vector.load %arg2[%c0_9, %c0_10] : memref<128x64xf32, #tpu.memory_space<vmem>>, vector<128x64xf32>
    %cst_11 = arith.constant dense<0.000000e+00> : vector<128x128xf32>
    %11 = tpu.matmul %10, %3, %cst_11 {dimension_numbers = #tpu.dot_dimension_numbers<[1], [0], [0], [1], [0, 0, 1, 1], [], []>} : vector<128x64xf32>, vector<64x128xf32>, vector<128x128xf32> -> vector<128x128xf32>
    %12 = arith.addf %9, %11 : vector<128x128xf32>
    %c0_12 = arith.constant 0 : index
    %c0_13 = arith.constant 0 : index
    %13 = vector.load %arg5[%c0_12, %c0_13] : memref<1x128xf32, #tpu.memory_space<vmem>>, vector<1x128xf32>
    %14 = vector.broadcast %13 : vector<1x128xf32> to vector<128x128xf32>
    %15 = arith.addf %12, %14 : vector<128x128xf32>
    %cst_14 = arith.constant 0.000000e+00 : f32
    %16 = vector.broadcast %cst_14 : f32 to vector<128x128xf32>
    %17 = arith.maximumf %15, %16 : vector<128x128xf32>
    %cst_15 = arith.constant dense<0.000000e+00> : vector<128x128xf32>
    %18 = tpu.matmul %17, %5, %cst_15 {dimension_numbers = #tpu.dot_dimension_numbers<[1], [0], [0], [1], [0, 0, 1, 1], [], []>} : vector<128x128xf32>, vector<128x128xf32>, vector<128x128xf32> -> vector<128x128xf32>
    %c0_16 = arith.constant 0 : index
    %c0_17 = arith.constant 0 : index
    %19 = vector.load %arg7[%c0_16, %c0_17] : memref<1x128xf32, #tpu.memory_space<vmem>>, vector<1x128xf32>
    %20 = vector.broadcast %19 : vector<1x128xf32> to vector<128x128xf32>
    %21 = arith.addf %18, %20 : vector<128x128xf32>
    %cst_18 = arith.constant 0.000000e+00 : f32
    %22 = vector.broadcast %cst_18 : f32 to vector<128x128xf32>
    %23 = arith.maximumf %21, %22 : vector<128x128xf32>
    %cst_19 = arith.constant dense<0.000000e+00> : vector<128x128xf32>
    %24 = tpu.matmul %23, %7, %cst_19 {dimension_numbers = #tpu.dot_dimension_numbers<[1], [0], [0], [1], [0, 0, 1, 1], [], []>} : vector<128x128xf32>, vector<128x128xf32>, vector<128x128xf32> -> vector<128x128xf32>
    %c0_20 = arith.constant 0 : index
    %c0_21 = arith.constant 0 : index
    %25 = vector.load %arg9[%c0_20, %c0_21] : memref<1x128xf32, #tpu.memory_space<vmem>>, vector<1x128xf32>
    %26 = vector.broadcast %25 : vector<1x128xf32> to vector<128x128xf32>
    %27 = arith.addf %24, %26 : vector<128x128xf32>
    %c0_22 = arith.constant 0 : index
    %c0_23 = arith.constant 0 : index
    %28 = vector.load %arg10[%c0_22, %c0_23] : memref<128x128xf32, #tpu.memory_space<vmem>>, vector<128x128xf32>
    tpu.vector_store %arg10[%c0_22, %c0_23], %27 {strides = array<i32>} : memref<128x128xf32, #tpu.memory_space<vmem>>, vector<128x128xf32>,
    return
  }
  func.func @transform_0(%arg0: i32) -> (i32, i32) {
    %c0_i32 = arith.constant 0 : i32
    %c0_i32_0 = arith.constant 0 : i32
    return %arg0, %c0_i32 : i32, i32
  }
  func.func @transform_1(%arg0: i32) -> (i32, i32) {
    %c0_i32 = arith.constant 0 : i32
    %c0_i32_0 = arith.constant 0 : i32
    return %arg0, %c0_i32 : i32, i32
  }
  func.func @transform_2(%arg0: i32) -> (i32, i32) {
    %c0_i32 = arith.constant 0 : i32
    %c0_i32_0 = arith.constant 0 : i32
    %c0_i32_1 = arith.constant 0 : i32
    return %c0_i32, %c0_i32_0 : i32, i32
  }
  func.func @transform_3(%arg0: i32) -> (i32, i32) {
    %c0_i32 = arith.constant 0 : i32
    %c0_i32_0 = arith.constant 0 : i32
    %c0_i32_1 = arith.constant 0 : i32
    return %c0_i32, %c0_i32_0 : i32, i32
  }
  func.func @transform_4(%arg0: i32) -> (i32, i32) {
    %c0_i32 = arith.constant 0 : i32
    %c0_i32_0 = arith.constant 0 : i32
    %c0_i32_1 = arith.constant 0 : i32
    return %c0_i32, %c0_i32_0 : i32, i32
  }
  func.func @transform_5(%arg0: i32) -> (i32, i32) {
    %c0_i32 = arith.constant 0 : i32
    %c0_i32_0 = arith.constant 0 : i32
    %c0_i32_1 = arith.constant 0 : i32
    return %c0_i32, %c0_i32_0 : i32, i32
  }
  func.func @transform_6(%arg0: i32) -> (i32, i32) {
    %c0_i32 = arith.constant 0 : i32
    %c0_i32_0 = arith.constant 0 : i32
    %c0_i32_1 = arith.constant 0 : i32
    return %c0_i32, %c0_i32_0 : i32, i32
  }
  func.func @transform_7(%arg0: i32) -> (i32, i32) {
    %c0_i32 = arith.constant 0 : i32
    %c0_i32_0 = arith.constant 0 : i32
    %c0_i32_1 = arith.constant 0 : i32
    return %c0_i32, %c0_i32_0 : i32, i32
  }
  func.func @transform_8(%arg0: i32) -> (i32, i32) {
    %c0_i32 = arith.constant 0 : i32
    %c0_i32_0 = arith.constant 0 : i32
    %c0_i32_1 = arith.constant 0 : i32
    return %c0_i32, %c0_i32_0 : i32, i32
  }
  func.func @transform_9(%arg0: i32) -> (i32, i32) {
    %c0_i32 = arith.constant 0 : i32
    %c0_i32_0 = arith.constant 0 : i32
    return %arg0, %c0_i32 : i32, i32
  }
}

</mosaic_0001>

<llo_original>
// kernel: inverse_model.1
$region0: #{inverse_model.1}
  #allocation0 [shape = 'u32[]', space=smem, size = 0x4, offset = 0x4, fixed_abs, tag = 'smem constant byte address 0x4 - core index']
  #allocation1 [shape = 'u32[144,128]{1,0:T(1,128)}', space=vmem, size = 0x12000, scoped, tag = 'internal scratch']
  %s0 = inlined_call_operand.vmem [shape: f32[256,64], index: 0, kind: input, shape index: {}]
  %s1 = inlined_call_operand.vmem [shape: f32[256,64], index: 1, kind: input, shape index: {}]
  %s2 = inlined_call_operand.vmem [shape: bf16[64,128], index: 2, kind: input, shape index: {}]
  %s3 = inlined_call_operand.vmem [shape: bf16[64,128], index: 3, kind: input, shape index: {}]
  %s4 = inlined_call_operand.vmem [shape: f32[1,128], index: 4, kind: input, shape index: {}]
  %s5 = inlined_call_operand.vmem [shape: bf16[128,128], index: 5, kind: input, shape index: {}]
  %s6 = inlined_call_operand.vmem [shape: f32[1,128], index: 6, kind: input, shape index: {}]
  %s7 = inlined_call_operand.vmem [shape: bf16[128,128], index: 7, kind: input, shape index: {}]
  %s8 = inlined_call_operand.vmem [shape: f32[1,128], index: 8, kind: input, shape index: {}]
  %s9 = inlined_call_operand.vmem [shape: f32[256,128], index: 9, kind: output, shape index: {}]
  %s10 = sld [smem:[#allocation0]]
  $region69: #{inverse_model.1} parent=0
    _
  %s12 = ssub.s32 1, %s10
  %s13 = scalar_select 0, %s12, %s10
  loop: start=0, step=1, limit=4
  $region2: #{inverse_model.1} parent=0 // loop_pre_header
    _
  $region3: #{inverse_model.1} parent=0 // loop_header
    %s15 = sphi 0, %s19
    %p16 = scmp.ge.s32.totalorder %s15, 4
    %s25 = sphi 0, %s27
    %s28 = sphi 0, %s25
    %s29 = sphi 0, %s28
    %s45 = sphi 0, %s29
    %s51 = sphi 0, %s53
    %s54 = sphi 0, %s51
    %s55 = sphi 0, %s54
    %s71 = sphi 0, %s55
    %s75 = sphi 0, %s75
    %s77 = sphi 0, %s75
    %s78 = sphi 0, %s77
    %s92 = sphi 0, %s78
    %s96 = sphi 0, %s96
    %s98 = sphi 0, %s96
    %s99 = sphi 0, %s98
    %s113 = sphi 0, %s99
    %s117 = sphi 0, %s117
    %s119 = sphi 0, %s117
    %s120 = sphi 0, %s119
    %s134 = sphi 0, %s120
    %s138 = sphi 0, %s138
    %s140 = sphi 0, %s138
    %s141 = sphi 0, %s140
    %s155 = sphi 0, %s141
    %s159 = sphi 0, %s159
    %s161 = sphi 0, %s159
    %s162 = sphi 0, %s161
    %s176 = sphi 0, %s162
    %s180 = sphi 0, %s180
    %s182 = sphi 0, %s180
    %s183 = sphi 0, %s182
    %s197 = sphi 0, %s183
    %s201 = sphi 0, %s201
    %s203 = sphi 0, %s201
    %s204 = sphi 0, %s203
    %s218 = sphi 0, %s204
    %s224 = sphi 0, %s226
    %s227 = sphi 0, %s224
    %s228 = sphi 0, %s227
    %s244 = sphi 0, %s228
  $region4: #{inverse_model.1} parent=0 // loop_header_branch
    %18 = sbr.rel (%p16) target = $region8
  $region5: #{inverse_model.1} parent=0 // loop_body
    %s20 = ssub.s32 %s15, 1
    %s21 = ssub.s32 %s15, 2
    %s22 = sadd.s32 %s15, 1
    %s23 = ssub.s32 %s15, %s22
    %p24 = scmp.eq.s32.totalorder %s23, 0
    %s26 = sadd.s32 %s25, 1
    %s27 = scalar_select %p24, %s25, %s26
    %p30 = pneg %p24
    %p31 = scmp.eq.s32.totalorder %s15, 1
    %p32 = por %p30, %p31
    %p33 = scmp.ne.s32.totalorder %s25, %s28
    %p34 = scmp.eq.s32.totalorder %s15, 0
    %p35 = por %p33, %p34
    %p36 = scmp.ne.s32.totalorder %s25, %s28
    %p37 = scmp.eq.s32.totalorder %s20, 1
    %p38 = por %p36, %p37
    %p39 = scmp.ne.s32.totalorder %s28, %s29
    %p40 = scmp.eq.s32.totalorder %s20, 0
    %p41 = por %p39, %p40
    %p42 = scmp.ne.s32.totalorder %s28, %s29
    %p43 = scmp.eq.s32.totalorder %s21, 1
    %p44 = por %p42, %p43
    %p46 = scmp.ne.s32.totalorder %s29, %s45
    %p47 = scmp.eq.s32.totalorder %s21, 0
    %p48 = por %p46, %p47
    %s49 = ssub.s32 %s15, %s22
    %p50 = scmp.eq.s32.totalorder %s49, 0
    %s52 = sadd.s32 %s51, 1
    %s53 = scalar_select %p50, %s51, %s52
    %p56 = pneg %p50
    %p57 = scmp.eq.s32.totalorder %s15, 1
    %p58 = por %p56, %p57
    %p59 = scmp.ne.s32.totalorder %s51, %s54
    %p60 = scmp.eq.s32.totalorder %s15, 0
    %p61 = por %p59, %p60
    %p62 = scmp.ne.s32.totalorder %s51, %s54
    %p63 = scmp.eq.s32.totalorder %s20, 1
    %p64 = por %p62, %p63
    %p65 = scmp.ne.s32.totalorder %s54, %s55
    %p66 = scmp.eq.s32.totalorder %s20, 0
    %p67 = por %p65, %p66
    %p68 = scmp.ne.s32.totalorder %s54, %s55
    %p69 = scmp.eq.s32.totalorder %s21, 1
    %p70 = por %p68, %p69
    %p72 = scmp.ne.s32.totalorder %s55, %s71
    %p73 = scmp.eq.s32.totalorder %s21, 0
    %p74 = por %p72, %p73
    %s76 = sadd.s32 %s75, 1
    %p79 = scmp.eq.s32.totalorder %s15, 1
    %p80 = scmp.ne.s32.totalorder %s75, %s77
    %p81 = scmp.eq.s32.totalorder %s15, 0
    %p82 = por %p80, %p81
    %p83 = scmp.ne.s32.totalorder %s75, %s77
    %p84 = scmp.eq.s32.totalorder %s20, 1
    %p85 = por %p83, %p84
    %p86 = scmp.ne.s32.totalorder %s77, %s78
    %p87 = scmp.eq.s32.totalorder %s20, 0
    %p88 = por %p86, %p87
    %p89 = scmp.ne.s32.totalorder %s77, %s78
    %p90 = scmp.eq.s32.totalorder %s21, 1
    %p91 = por %p89, %p90
    %p93 = scmp.ne.s32.totalorder %s78, %s92
    %p94 = scmp.eq.s32.totalorder %s21, 0
    %p95 = por %p93, %p94
    %s97 = sadd.s32 %s96, 1
    %p100 = scmp.eq.s32.totalorder %s15, 1
    %p101 = scmp.ne.s32.totalorder %s96, %s98
    %p102 = scmp.eq.s32.totalorder %s15, 0
    %p103 = por %p101, %p102
    %p104 = scmp.ne.s32.totalorder %s96, %s98
    %p105 = scmp.eq.s32.totalorder %s20, 1
    %p106 = por %p104, %p105
    %p107 = scmp.ne.s32.totalorder %s98, %s99
    %p108 = scmp.eq.s32.totalorder %s20, 0
    %p109 = por %p107, %p108
    %p110 = scmp.ne.s32.totalorder %s98, %s99
    %p111 = scmp.eq.s32.totalorder %s21, 1
    %p112 = por %p110, %p111
    %p114 = scmp.ne.s32.totalorder %s99, %s113
    %p115 = scmp.eq.s32.totalorder %s21, 0
    %p116 = por %p114, %p115
    %s118 = sadd.s32 %s117, 1
    %p121 = scmp.eq.s32.totalorder %s15, 1
    %p122 = scmp.ne.s32.totalorder %s117, %s119
    %p123 = scmp.eq.s32.totalorder %s15, 0
    %p124 = por %p122, %p123
    %p125 = scmp.ne.s32.totalorder %s117, %s119
    %p126 = scmp.eq.s32.totalorder %s20, 1
    %p127 = por %p125, %p126
    %p128 = scmp.ne.s32.totalorder %s119, %s120
    %p129 = scmp.eq.s32.totalorder %s20, 0
    %p130 = por %p128, %p129
    %p131 = scmp.ne.s32.totalorder %s119, %s120
    %p132 = scmp.eq.s32.totalorder %s21, 1
    %p133 = por %p131, %p132
    %p135 = scmp.ne.s32.totalorder %s120, %s134
    %p136 = scmp.eq.s32.totalorder %s21, 0
    %p137 = por %p135, %p136
    %s139 = sadd.s32 %s138, 1
    %p142 = scmp.eq.s32.totalorder %s15, 1
    %p143 = scmp.ne.s32.totalorder %s138, %s140
    %p144 = scmp.eq.s32.totalorder %s15, 0
    %p145 = por %p143, %p144
    %p146 = scmp.ne.s32.totalorder %s138, %s140
    %p147 = scmp.eq.s32.totalorder %s20, 1
    %p148 = por %p146, %p147
    %p149 = scmp.ne.s32.totalorder %s140, %s141
    %p150 = scmp.eq.s32.totalorder %s20, 0
    %p151 = por %p149, %p150
    %p152 = scmp.ne.s32.totalorder %s140, %s141
    %p153 = scmp.eq.s32.totalorder %s21, 1
    %p154 = por %p152, %p153
    %p156 = scmp.ne.s32.totalorder %s141, %s155
    %p157 = scmp.eq.s32.totalorder %s21, 0
    %p158 = por %p156, %p157
    %s160 = sadd.s32 %s159, 1
    %p163 = scmp.eq.s32.totalorder %s15, 1
    %p164 = scmp.ne.s32.totalorder %s159, %s161
    %p165 = scmp.eq.s32.totalorder %s15, 0
    %p166 = por %p164, %p165
    %p167 = scmp.ne.s32.totalorder %s159, %s161
    %p168 = scmp.eq.s32.totalorder %s20, 1
    %p169 = por %p167, %p168
    %p170 = scmp.ne.s32.totalorder %s161, %s162
    %p171 = scmp.eq.s32.totalorder %s20, 0
    %p172 = por %p170, %p171
    %p173 = scmp.ne.s32.totalorder %s161, %s162
    %p174 = scmp.eq.s32.totalorder %s21, 1
    %p175 = por %p173, %p174
    %p177 = scmp.ne.s32.totalorder %s162, %s176
    %p178 = scmp.eq.s32.totalorder %s21, 0
    %p179 = por %p177, %p178
    %s181 = sadd.s32 %s180, 1
    %p184 = scmp.eq.s32.totalorder %s15, 1
    %p185 = scmp.ne.s32.totalorder %s180, %s182
    %p186 = scmp.eq.s32.totalorder %s15, 0
    %p187 = por %p185, %p186
    %p188 = scmp.ne.s32.totalorder %s180, %s182
    %p189 = scmp.eq.s32.totalorder %s20, 1
    %p190 = por %p188, %p189
    %p191 = scmp.ne.s32.totalorder %s182, %s183
    %p192 = scmp.eq.s32.totalorder %s20, 0
    %p193 = por %p191, %p192
    %p194 = scmp.ne.s32.totalorder %s182, %s183
    %p195 = scmp.eq.s32.totalorder %s21, 1
    %p196 = por %p194, %p195
    %p198 = scmp.ne.s32.totalorder %s183, %s197
    %p199 = scmp.eq.s32.totalorder %s21, 0
    %p200 = por %p198, %p199
    %s202 = sadd.s32 %s201, 1
    %p205 = scmp.eq.s32.totalorder %s15, 1
    %p206 = scmp.ne.s32.totalorder %s201, %s203
    %p207 = scmp.eq.s32.totalorder %s15, 0
    %p208 = por %p206, %p207
    %p209 = scmp.ne.s32.totalorder %s201, %s203
    %p210 = scmp.eq.s32.totalorder %s20, 1
    %p211 = por %p209, %p210
    %p212 = scmp.ne.s32.totalorder %s203, %s204
    %p213 = scmp.eq.s32.totalorder %s20, 0
    %p214 = por %p212, %p213
    %p215 = scmp.ne.s32.totalorder %s203, %s204
    %p216 = scmp.eq.s32.totalorder %s21, 1
    %p217 = por %p215, %p216
    %p219 = scmp.ne.s32.totalorder %s204, %s218
    %p220 = scmp.eq.s32.totalorder %s21, 0
    %p221 = por %p219, %p220
    %s222 = ssub.s32 %s15, %s22
    %p223 = scmp.eq.s32.totalorder %s222, 0
    %s225 = sadd.s32 %s224, 1
    %s226 = scalar_select %p223, %s224, %s225
    %p229 = pneg %p223
    %p230 = scmp.eq.s32.totalorder %s15, 1
    %p231 = por %p229, %p230
    %p232 = scmp.ne.s32.totalorder %s224, %s227
    %p233 = scmp.eq.s32.totalorder %s15, 0
    %p234 = por %p232, %p233
    %p235 = scmp.ne.s32.totalorder %s224, %s227
    %p236 = scmp.eq.s32.totalorder %s20, 1
    %p237 = por %p235, %p236
    %p238 = scmp.ne.s32.totalorder %s227, %s228
    %p239 = scmp.eq.s32.totalorder %s20, 0
    %p240 = por %p238, %p239
    %p241 = scmp.ne.s32.totalorder %s227, %s228
    %p242 = scmp.eq.s32.totalorder %s21, 1
    %p243 = por %p241, %p242
    %p245 = scmp.ne.s32.totalorder %s228, %s244
    %p246 = scmp.eq.s32.totalorder %s21, 0
    %p247 = por %p245, %p246
    %p248 = scmp.le.s32.totalorder 1, %s15
    %p249 = scmp.lt.s32.totalorder %s15, 3
    %p250 = pnand %p248, %p249
    %p251 = pneg %p250
    // Predicated region
    $region9: #{inverse_model.1} parent=5 // pred_check
      _
    $region10: #{inverse_model.1} parent=5 // pred_check_branch
      %253 = sbr.rel (%p250) target = $region12
    $region11: #{inverse_model.1} parent=5 // pred_region
      %s254 = ssub.s32 %s15, 1
      // Predicated region
      $region13: #{inverse_model.1} parent=11 // pred_check
        %p255 = pneg %p88
      $region14: #{inverse_model.1} parent=11 // pred_check_branch
        %257 = sbr.rel (%p255) target = $region16
      $region15: #{inverse_model.1} parent=11 // pred_region
        _
      $region16: #{inverse_model.1} parent=11 // pred_fallthru
        _
      // Predicated region
      $region17: #{inverse_model.1} parent=11 // pred_check
        %p258 = pneg %p109
      $region18: #{inverse_model.1} parent=11 // pred_check_branch
        %260 = sbr.rel (%p258) target = $region20
      $region19: #{inverse_model.1} parent=11 // pred_region
        _
      $region20: #{inverse_model.1} parent=11 // pred_fallthru
        _
      // Predicated region
      $region21: #{inverse_model.1} parent=11 // pred_check
        %p261 = pneg %p130
      $region22: #{inverse_model.1} parent=11 // pred_check_branch
        %263 = sbr.rel (%p261) target = $region24
      $region23: #{inverse_model.1} parent=11 // pred_region
        _
      $region24: #{inverse_model.1} parent=11 // pred_fallthru
        _
      // Predicated region
      $region25: #{inverse_model.1} parent=11 // pred_check
        %p264 = pneg %p151
      $region26: #{inverse_model.1} parent=11 // pred_check_branch
        %266 = sbr.rel (%p264) target = $region28
      $region27: #{inverse_model.1} parent=11 // pred_region
        _
      $region28: #{inverse_model.1} parent=11 // pred_fallthru
        _
      // Predicated region
      $region29: #{inverse_model.1} parent=11 // pred_check
        %p267 = pneg %p172
      $region30: #{inverse_model.1} parent=11 // pred_check_branch
        %269 = sbr.rel (%p267) target = $region32
      $region31: #{inverse_model.1} parent=11 // pred_region
        _
      $region32: #{inverse_model.1} parent=11 // pred_fallthru
        _
      // Predicated region
      $region33: #{inverse_model.1} parent=11 // pred_check
        %p270 = pneg %p193
      $region34: #{inverse_model.1} parent=11 // pred_check_branch
        %272 = sbr.rel (%p270) target = $region36
      $region35: #{inverse_model.1} parent=11 // pred_region
        _
      $region36: #{inverse_model.1} parent=11 // pred_fallthru
        _
      // Predicated region
      $region37: #{inverse_model.1} parent=11 // pred_check
        %p273 = pneg %p214
      $region38: #{inverse_model.1} parent=11 // pred_check_branch
        %275 = sbr.rel (%p273) target = $region40
      $region39: #{inverse_model.1} parent=11 // pred_region
        _
      $region40: #{inverse_model.1} parent=11 // pred_fallthru
        _
    $region12: #{inverse_model.1} parent=5 // pred_fallthru
      _
    %p276 = scmp.lt.s32.totalorder %s15, 2
    // Predicated region
    $region41: #{inverse_model.1} parent=5 // pred_check
      %p277 = pneg %p276
    $region42: #{inverse_model.1} parent=5 // pred_check_branch
      %279 = sbr.rel (%p277) target = $region44
    $region43: #{inverse_model.1} parent=5 // pred_region
      // Predicated region
      $region45: #{inverse_model.1} parent=43 // pred_check
        %p280 = pneg %p35
      $region46: #{inverse_model.1} parent=43 // pred_check_branch
        %282 = sbr.rel (%p280) target = $region48
      $region47: #{inverse_model.1} parent=43 // pred_region
        %s283 = smul.u32 16, %s15
        %p284 = scmp.lt.s32.totalorder %s283, 31
        %s285 = scalar_select %p284, %s283, 31
        %s286 = smul.addr %s285, 8
        %s287 = scalar_lea.vmem %s0, %s286
        %s288 = smul.u32 16, %s15
      $region48: #{inverse_model.1} parent=43 // pred_fallthru
        _
      // Predicated region
      $region49: #{inverse_model.1} parent=43 // pred_check
        %p289 = pneg %p61
      $region50: #{inverse_model.1} parent=43 // pred_check_branch
        %291 = sbr.rel (%p289) target = $region52
      $region51: #{inverse_model.1} parent=43 // pred_region
        %s292 = smul.u32 16, %s15
        %p293 = scmp.lt.s32.totalorder %s292, 31
        %s294 = scalar_select %p293, %s292, 31
        %s295 = smul.addr %s294, 8
        %s296 = scalar_lea.vmem %s1, %s295
        %s297 = smul.u32 16, %s15
      $region52: #{inverse_model.1} parent=43 // pred_fallthru
        _
    $region44: #{inverse_model.1} parent=5 // pred_fallthru
      _
    %p298 = scmp.le.s32.totalorder 1, %s15
    %p299 = scmp.lt.s32.totalorder %s15, 3
    %p300 = pnand %p298, %p299
    %p301 = pneg %p300
    // Predicated region
    $region53: #{inverse_model.1} parent=5 // pred_check
      _
    $region54: #{inverse_model.1} parent=5 // pred_check_branch
      %303 = sbr.rel (%p300) target = $region56
    $region55: #{inverse_model.1} parent=5 // pred_region
      %s304 = ssub.s32 %s15, 1
      %s305 = smul.u32 16, %s20
      %p306 = scmp.lt.s32.totalorder %s305, 31
      %s307 = scalar_select %p306, %s305, 31
      %s308 = smul.addr %s307, 8
      %s309 = scalar_lea.vmem %s0, %s308
      %p310 = pneg %p41
      %p311 = pneg %p38
      %s312 = smul.u32 16, %s20
      %p313 = scmp.lt.s32.totalorder %s312, 31
      %s314 = scalar_select %p313, %s312, 31
      %s315 = smul.addr %s314, 8
      %s316 = scalar_lea.vmem %s1, %s315
      %p317 = pneg %p67
      %p318 = pneg %p64
      %p319 = pneg %p88
      %p320 = pneg %p85
      %p321 = pneg %p109
      %p322 = pneg %p106
      %p323 = pneg %p130
      %p324 = pneg %p127
      %p325 = pneg %p151
      %p326 = pneg %p148
      %p327 = pneg %p172
      %p328 = pneg %p169
      %p329 = pneg %p193
      %p330 = pneg %p190
      %p331 = pneg %p214
      %p332 = pneg %p211
      %p333 = pneg %p240
      %p334 = pneg %p237
      %s335 = smul.u32 16, %s20
      %p336 = scmp.lt.s32.totalorder %s335, 31
      %s337 = scalar_select %p336, %s335, 31
      %s338 = smul.addr %s337, 8
      %s339 = scalar_lea.vmem %s9, %s338
      %s340 = smul.u32 16, %s20
      %p341 = scmp.lt.s32.totalorder %s340, 31
      %s342 = scalar_select %p341, %s340, 31
      %s343 = smul.addr %s342, 8
      %s344 = scalar_lea.vmem %s0, %s343
      %s345 = smul.u32 16, %s20
      %s346 = smul.u32 16, %s20
      %p347 = scmp.lt.s32.totalorder %s346, 31
      %s348 = scalar_select %p347, %s346, 31
      %s349 = smul.addr %s348, 8
      %s350 = scalar_lea.vmem %s1, %s349
      %s351 = smul.u32 16, %s20
      %s352 = smul.u32 16, %s20
      %p353 = scmp.lt.s32.totalorder %s352, 31
      %s354 = scalar_select %p353, %s352, 31
      %s355 = smul.addr %s354, 8
      %s356 = scalar_lea.vmem %s9, %s355
      %s357 = smul.u32 16, %s20
      %v358 = vld [vmem:[%s2] sm:$0xf]
      %v359 = vld [vmem:[%s2 + $0x4] sm:$0xf]
      %v360 = vld [vmem:[%s2 + $0x8] sm:$0xf]
      %v361 = vld [vmem:[%s2 + $0xc] sm:$0xf]
      %v362 = vld [vmem:[%s2 + $0x10] sm:$0xf]
      %v363 = vld [vmem:[%s2 + $0x14] sm:$0xf]
      %v364 = vld [vmem:[%s2 + $0x18] sm:$0xf]
      %v365 = vld [vmem:[%s2 + $0x1c] sm:$0xf]
      %v366 = vunpack.c.l.bf16 %v358
      %v367 = vunpack.c.l.bf16 %v359
      %v368 = vunpack.c.l.bf16 %v360
      %v369 = vunpack.c.l.bf16 %v361
      %v370 = vunpack.c.l.bf16 %v362
      %v371 = vunpack.c.l.bf16 %v363
      %v372 = vunpack.c.l.bf16 %v364
      %v373 = vunpack.c.l.bf16 %v365
      %v374 = vld [vmem:[%s3] sm:$0xf]
      %v375 = vld [vmem:[%s3 + $0x4] sm:$0xf]
      %v376 = vld [vmem:[%s3 + $0x8] sm:$0xf]
      %v377 = vld [vmem:[%s3 + $0xc] sm:$0xf]
      %v378 = vld [vmem:[%s3 + $0x10] sm:$0xf]
      %v379 = vld [vmem:[%s3 + $0x14] sm:$0xf]
      %v380 = vld [vmem:[%s3 + $0x18] sm:$0xf]
      %v381 = vld [vmem:[%s3 + $0x1c] sm:$0xf]
      %v382 = vunpack.c.l.bf16 %v374
      %v383 = vunpack.c.l.bf16 %v375
      %v384 = vunpack.c.l.bf16 %v376
      %v385 = vunpack.c.l.bf16 %v377
      %v386 = vunpack.c.l.bf16 %v378
      %v387 = vunpack.c.l.bf16 %v379
      %v388 = vunpack.c.l.bf16 %v380
      %v389 = vunpack.c.l.bf16 %v381
      %v390 = vld [vmem:[%s5] sm:$0xf]
      %v391 = vld [vmem:[%s5 + $0x4] sm:$0xf]
      %v392 = vld [vmem:[%s5 + $0x8] sm:$0xf]
      %v393 = vld [vmem:[%s5 + $0xc] sm:$0xf]
      %v394 = vld [vmem:[%s5 + $0x10] sm:$0xf]
      %v395 = vld [vmem:[%s5 + $0x14] sm:$0xf]
      %v396 = vld [vmem:[%s5 + $0x18] sm:$0xf]
      %v397 = vld [vmem:[%s5 + $0x1c] sm:$0xf]
      %v398 = vld [vmem:[%s5 + $0x20] sm:$0xf]
      %v399 = vld [vmem:[%s5 + $0x24] sm:$0xf]
      %v400 = vld [vmem:[%s5 + $0x28] sm:$0xf]
      %v401 = vld [vmem:[%s5 + $0x2c] sm:$0xf]
      %v402 = vld [vmem:[%s5 + $0x30] sm:$0xf]
      %v403 = vld [vmem:[%s5 + $0x34] sm:$0xf]
      %v404 = vld [vmem:[%s5 + $0x38] sm:$0xf]
      %v405 = vld [vmem:[%s5 + $0x3c] sm:$0xf]
      %v406 = vunpack.c.l.bf16 %v390
      %v407 = vunpack.c.l.bf16 %v391
      %v408 = vunpack.c.l.bf16 %v392
      %v409 = vunpack.c.l.bf16 %v393
      %v410 = vunpack.c.l.bf16 %v394
      %v411 = vunpack.c.l.bf16 %v395
      %v412 = vunpack.c.l.bf16 %v396
      %v413 = vunpack.c.l.bf16 %v397
      %v414 = vunpack.c.l.bf16 %v398
      %v415 = vunpack.c.l.bf16 %v399
      %v416 = vunpack.c.l.bf16 %v400
      %v417 = vunpack.c.l.bf16 %v401
      %v418 = vunpack.c.l.bf16 %v402
      %v419 = vunpack.c.l.bf16 %v403
      %v420 = vunpack.c.l.bf16 %v404
      %v421 = vunpack.c.l.bf16 %v405
      %v422 = vld [vmem:[%s7] sm:$0xf]
      %v423 = vld [vmem:[%s7 + $0x4] sm:$0xf]
      %v424 = vld [vmem:[%s7 + $0x8] sm:$0xf]
      %v425 = vld [vmem:[%s7 + $0xc] sm:$0xf]
      %v426 = vld [vmem:[%s7 + $0x10] sm:$0xf]
      %v427 = vld [vmem:[%s7 + $0x14] sm:$0xf]
      %v428 = vld [vmem:[%s7 + $0x18] sm:$0xf]
      %v429 = vld [vmem:[%s7 + $0x1c] sm:$0xf]
      %v430 = vld [vmem:[%s7 + $0x20] sm:$0xf]
      %v431 = vld [vmem:[%s7 + $0x24] sm:$0xf]
      %v432 = vld [vmem:[%s7 + $0x28] sm:$0xf]
      %v433 = vld [vmem:[%s7 + $0x2c] sm:$0xf]
      %v434 = vld [vmem:[%s7 + $0x30] sm:$0xf]
      %v435 = vld [vmem:[%s7 + $0x34] sm:$0xf]
      %v436 = vld [vmem:[%s7 + $0x38] sm:$0xf]
      %v437 = vld [vmem:[%s7 + $0x3c] sm:$0xf]
      %v438 = vunpack.c.l.bf16 %v422
      %v439 = vunpack.c.l.bf16 %v423
      %v440 = vunpack.c.l.bf16 %v424
      %v441 = vunpack.c.l.bf16 %v425
      %v442 = vunpack.c.l.bf16 %v426
      %v443 = vunpack.c.l.bf16 %v427
      %v444 = vunpack.c.l.bf16 %v428
      %v445 = vunpack.c.l.bf16 %v429
      %v446 = vunpack.c.l.bf16 %v430
      %v447 = vunpack.c.l.bf16 %v431
      %v448 = vunpack.c.l.bf16 %v432
      %v449 = vunpack.c.l.bf16 %v433
      %v450 = vunpack.c.l.bf16 %v434
      %v451 = vunpack.c.l.bf16 %v435
      %v452 = vunpack.c.l.bf16 %v436
      %v453 = vunpack.c.l.bf16 %v437
      %v454 = vld [vmem:[%s344] sm:$0xff]
      %v455 = vld [vmem:[%s344 + $0x8] sm:$0xff]
      %v456 = vld [vmem:[%s344 + $0x10] sm:$0xff]
      %v457 = vld [vmem:[%s344 + $0x18] sm:$0xff]
      %v458 = vld [vmem:[%s344 + $0x20] sm:$0xff]
      %v459 = vld [vmem:[%s344 + $0x28] sm:$0xff]
      %v460 = vld [vmem:[%s344 + $0x30] sm:$0xff]
      %v461 = vld [vmem:[%s344 + $0x38] sm:$0xff]
      %v462 = vld [vmem:[%s344 + $0x40] sm:$0xff]
      %v463 = vld [vmem:[%s344 + $0x48] sm:$0xff]
      %v464 = vld [vmem:[%s344 + $0x50] sm:$0xff]
      %v465 = vld [vmem:[%s344 + $0x58] sm:$0xff]
      %v466 = vld [vmem:[%s344 + $0x60] sm:$0xff]
      %v467 = vld [vmem:[%s344 + $0x68] sm:$0xff]
      %v468 = vld [vmem:[%s344 + $0x70] sm:$0xff]
      %v469 = vld [vmem:[%s344 + $0x78] sm:$0xff]
      %v470 = vld [vmem:[%s350] sm:$0xff]
      %v471 = vld [vmem:[%s350 + $0x8] sm:$0xff]
      %v472 = vld [vmem:[%s350 + $0x10] sm:$0xff]
      %v473 = vld [vmem:[%s350 + $0x18] sm:$0xff]
      %v474 = vld [vmem:[%s350 + $0x20] sm:$0xff]
      %v475 = vld [vmem:[%s350 + $0x28] sm:$0xff]
      %v476 = vld [vmem:[%s350 + $0x30] sm:$0xff]
      %v477 = vld [vmem:[%s350 + $0x38] sm:$0xff]
      %v478 = vld [vmem:[%s350 + $0x40] sm:$0xff]
      %v479 = vld [vmem:[%s350 + $0x48] sm:$0xff]
      %v480 = vld [vmem:[%s350 + $0x50] sm:$0xff]
      %v481 = vld [vmem:[%s350 + $0x58] sm:$0xff]
      %v482 = vld [vmem:[%s350 + $0x60] sm:$0xff]
      %v483 = vld [vmem:[%s350 + $0x68] sm:$0xff]
      %v484 = vld [vmem:[%s350 + $0x70] sm:$0xff]
      %v485 = vld [vmem:[%s350 + $0x78] sm:$0xff]
      %vm486 = vcmask 523264
      %v488 = vsel %vm486, %v470, 0
      %v491 = vsel %vm486, %v471, 0
      %v494 = vsel %vm486, %v472, 0
      %v497 = vsel %vm486, %v473, 0
      %v500 = vsel %vm486, %v474, 0
      %v503 = vsel %vm486, %v475, 0
      %v506 = vsel %vm486, %v476, 0
      %v509 = vsel %vm486, %v477, 0
      %v512 = vsel %vm486, %v478, 0
      %v515 = vsel %vm486, %v479, 0
      %v518 = vsel %vm486, %v480, 0
      %v521 = vsel %vm486, %v481, 0
      %v524 = vsel %vm486, %v482, 0
      %v527 = vsel %vm486, %v483, 0
      %v530 = vsel %vm486, %v484, 0
      %v533 = vsel %vm486, %v485, 0
      %535 = vmatprep.subr.mxu0 0.0
      %536 = vmatpush1.msra.mxu0 %v382
      %537 = vmatprep.subr.mxu0 0.0
      %538 = vmatpush1.msra.mxu0 %v383
      %539 = vmatprep.subr.mxu0 0.0
      %540 = vmatpush1.msra.mxu0 %v384
      %541 = vmatprep.subr.mxu0 0.0
      %542 = vmatpush1.msra.mxu0 %v385
      %543 = vmatprep.subr.mxu0 0.0
      %544 = vmatpush1.msra.mxu0 %v386
      %545 = vmatprep.subr.mxu0 0.0
      %546 = vmatpush1.msra.mxu0 %v387
      %547 = vmatprep.subr.mxu0 0.0
      %548 = vmatpush1.msra.mxu0 %v388
      %549 = vmatprep.subr.mxu0 0.0
      %550 = vmatpush1.msra.mxu0 %v389
      %551 = vmatprep.subr.mxu0 0.0
      %552 = vmatpush1.msra.mxu0 0.0
      %553 = vmatprep.subr.mxu0 0.0
      %554 = vmatpush1.msra.mxu0 0.0
      %555 = vmatprep.subr.mxu0 0.0
      %556 = vmatpush1.msra.mxu0 0.0
      %557 = vmatprep.subr.mxu0 0.0
      %558 = vmatpush1.msra.mxu0 0.0
      %559 = vmatprep.subr.mxu0 0.0
      %560 = vmatpush1.msra.mxu0 0.0
      %561 = vmatprep.subr.mxu0 0.0
      %562 = vmatpush1.msra.mxu0 0.0
      %563 = vmatprep.subr.mxu0 0.0
      %564 = vmatpush1.msra.mxu0 0.0
      %565 = vmatprep.subr.mxu0 0.0
      %566 = vmatpush1.msra.mxu0 0.0
      %567 = vmatprep.subr.mxu0 0.0
      %568 = vmatpush1.msra.mxu0 0.0
      %569 = vmatprep.subr.mxu0 0.0
      %570 = vmatpush1.msra.mxu0 0.0
      %571 = vmatprep.subr.mxu0 0.0
      %572 = vmatpush1.msra.mxu0 0.0
      %573 = vmatprep.subr.mxu0 0.0
      %574 = vmatpush1.msra.mxu0 0.0
      %575 = vmatprep.subr.mxu0 0.0
      %576 = vmatpush1.msra.mxu0 0.0
      %577 = vmatprep.subr.mxu0 0.0
      %578 = vmatpush1.msra.mxu0 0.0
      %579 = vmatprep.subr.mxu0 0.0
      %580 = vmatpush1.msra.mxu0 0.0
      %581 = vmatprep.subr.mxu0 0.0
      %582 = vmatpush1.msra.mxu0 0.0
      %583 = vmatprep.subr.mxu0 0.0
      %584 = vmatpush1.msra.mxu0 0.0
      %585 = vmatprep.subr.mxu0 0.0
      %586 = vmatpush1.msra.mxu0 0.0
      %587 = vmatprep.subr.mxu0 0.0
      %588 = vmatpush1.msra.mxu0 0.0
      %589 = vmatprep.subr.mxu0 0.0
      %590 = vmatpush1.msra.mxu0 0.0
      %591 = vmatprep.subr.mxu0 0.0
      %592 = vmatpush1.msra.mxu0 0.0
      %593 = vmatprep.subr.mxu0 0.0
      %594 = vmatpush1.msra.mxu0 0.0
      %595 = vmatprep.subr.mxu0 0.0
      %596 = vmatpush1.msra.mxu0 0.0
      %597 = vmatprep.subr.mxu0 0.0
      %598 = vmatpush1.msra.mxu0 0.0
      %599 = vmatprep.mubr.f32.mxu0 0.0
      %600 = vmatmul.mubr.f32.gmra.mrb[0].mxu0 %v488
      %v601 = vpop.f32.mrb[0].mxu0
      %v602 = vadd.f32 0.0, %v601
      %v603 = vpop.f32.mrb[0].mxu0
      %604 = vmatprep.mubr.f32.mxu0 0.0
      %605 = vmatmul.mubr.f32.gmra.mrb[0].mxu0 %v491
      %v606 = vpop.f32.mrb[0].mxu0
      %v607 = vadd.f32 0.0, %v606
      %v608 = vpop.f32.mrb[0].mxu0
      %609 = vmatprep.mubr.f32.mxu0 0.0
      %610 = vmatmul.mubr.f32.gmra.mrb[0].mxu0 %v494
      %v611 = vpop.f32.mrb[0].mxu0
      %v612 = vadd.f32 0.0, %v611
      %v613 = vpop.f32.mrb[0].mxu0
      %614 = vmatprep.mubr.f32.mxu0 0.0
      %615 = vmatmul.mubr.f32.gmra.mrb[0].mxu0 %v497
      %v616 = vpop.f32.mrb[0].mxu0
      %v617 = vadd.f32 0.0, %v616
      %v618 = vpop.f32.mrb[0].mxu0
      %619 = vmatprep.mubr.f32.mxu0 0.0
      %620 = vmatmul.mubr.f32.gmra.mrb[0].mxu0 %v500
      %v621 = vpop.f32.mrb[0].mxu0
      %v622 = vadd.f32 0.0, %v621
      %v623 = vpop.f32.mrb[0].mxu0
      %624 = vmatprep.mubr.f32.mxu0 0.0
      %625 = vmatmul.mubr.f32.gmra.mrb[0].mxu0 %v503
      %v626 = vpop.f32.mrb[0].mxu0
      %v627 = vadd.f32 0.0, %v626
      %v628 = vpop.f32.mrb[0].mxu0
      %629 = vmatprep.mubr.f32.mxu0 0.0
      %630 = vmatmul.mubr.f32.gmra.mrb[0].mxu0 %v506
      %v631 = vpop.f32.mrb[0].mxu0
      %v632 = vadd.f32 0.0, %v631
      %v633 = vpop.f32.mrb[0].mxu0
      %634 = vmatprep.mubr.f32.mxu0 0.0
      %635 = vmatmul.mubr.f32.gmra.mrb[0].mxu0 %v509
      %v636 = vpop.f32.mrb[0].mxu0
      %v637 = vadd.f32 0.0, %v636
      %v638 = vpop.f32.mrb[0].mxu0
      %639 = vmatprep.mubr.f32.mxu0 0.0
      %640 = vmatmul.mubr.f32.gmra.mrb[0].mxu0 %v512
      %v641 = vpop.f32.mrb[0].mxu0
      %v642 = vadd.f32 0.0, %v641
      %v643 = vpop.f32.mrb[0].mxu0
      %644 = vmatprep.mubr.f32.mxu0 0.0
      %645 = vmatmul.mubr.f32.gmra.mrb[0].mxu0 %v515
      %v646 = vpop.f32.mrb[0].mxu0
      %v647 = vadd.f32 0.0, %v646
      %v648 = vpop.f32.mrb[0].mxu0
      %649 = vmatprep.mubr.f32.mxu0 0.0
      %650 = vmatmul.mubr.f32.gmra.mrb[0].mxu0 %v518
      %v651 = vpop.f32.mrb[0].mxu0
      %v652 = vadd.f32 0.0, %v651
      %v653 = vpop.f32.mrb[0].mxu0
      %654 = vmatprep.mubr.f32.mxu0 0.0
      %655 = vmatmul.mubr.f32.gmra.mrb[0].mxu0 %v521
      %v656 = vpop.f32.mrb[0].mxu0
      %v657 = vadd.f32 0.0, %v656
      %v658 = vpop.f32.mrb[0].mxu0
      %659 = vmatprep.mubr.f32.mxu0 0.0
      %660 = vmatmul.mubr.f32.gmra.mrb[0].mxu0 %v524
      %v661 = vpop.f32.mrb[0].mxu0
      %v662 = vadd.f32 0.0, %v661
      %v663 = vpop.f32.mrb[0].mxu0
      %664 = vmatprep.mubr.f32.mxu0 0.0
      %665 = vmatmul.mubr.f32.gmra.mrb[0].mxu0 %v527
      %v666 = vpop.f32.mrb[0].mxu0
      %v667 = vadd.f32 0.0, %v666
      %v668 = vpop.f32.mrb[0].mxu0
      %669 = vmatprep.mubr.f32.mxu0 0.0
      %670 = vmatmul.mubr.f32.gmra.mrb[0].mxu0 %v530
      %v671 = vpop.f32.mrb[0].mxu0
      %v672 = vadd.f32 0.0, %v671
      %v673 = vpop.f32.mrb[0].mxu0
      %674 = vmatprep.mubr.f32.mxu0 0.0
      %675 = vmatmul.mubr.f32.gmra.mrb[0].mxu0 %v533
      %v676 = vpop.f32.mrb[0].mxu0
      %v677 = vadd.f32 0.0, %v676
      %v678 = vpop.f32.mrb[0].mxu0
      %679 = vdwg.mxu0
      %v681 = vsel %vm486, %v454, 0
      %v684 = vsel %vm486, %v455, 0
      %v687 = vsel %vm486, %v456, 0
      %v690 = vsel %vm486, %v457, 0
      %v693 = vsel %vm486, %v458, 0
      %v696 = vsel %vm486, %v459, 0
      %v699 = vsel %vm486, %v460, 0
      %v702 = vsel %vm486, %v461, 0
      %v705 = vsel %vm486, %v462, 0
      %v708 = vsel %vm486, %v463, 0
      %v711 = vsel %vm486, %v464, 0
      %v714 = vsel %vm486, %v465, 0
      %v717 = vsel %vm486, %v466, 0
      %v720 = vsel %vm486, %v467, 0
      %v723 = vsel %vm486, %v468, 0
      %v726 = vsel %vm486, %v469, 0
      %728 = vmatprep.subr.mxu0 0.0
      %729 = vmatpush1.msra.mxu0 %v366
      %730 = vmatprep.subr.mxu0 0.0
      %731 = vmatpush1.msra.mxu0 %v367
      %732 = vmatprep.subr.mxu0 0.0
      %733 = vmatpush1.msra.mxu0 %v368
      %734 = vmatprep.subr.mxu0 0.0
      %735 = vmatpush1.msra.mxu0 %v369
      %736 = vmatprep.subr.mxu0 0.0
      %737 = vmatpush1.msra.mxu0 %v370
      %738 = vmatprep.subr.mxu0 0.0
      %739 = vmatpush1.msra.mxu0 %v371
      %740 = vmatprep.subr.mxu0 0.0
      %741 = vmatpush1.msra.mxu0 %v372
      %742 = vmatprep.subr.mxu0 0.0
      %743 = vmatpush1.msra.mxu0 %v373
      %744 = vmatprep.subr.mxu0 0.0
      %745 = vmatpush1.msra.mxu0 0.0
      %746 = vmatprep.subr.mxu0 0.0
      %747 = vmatpush1.msra.mxu0 0.0
      %748 = vmatprep.subr.mxu0 0.0
      %749 = vmatpush1.msra.mxu0 0.0
      %750 = vmatprep.subr.mxu0 0.0
      %751 = vmatpush1.msra.mxu0 0.0
      %752 = vmatprep.subr.mxu0 0.0
      %753 = vmatpush1.msra.mxu0 0.0
      %754 = vmatprep.subr.mxu0 0.0
      %755 = vmatpush1.msra.mxu0 0.0
      %756 = vmatprep.subr.mxu0 0.0
      %757 = vmatpush1.msra.mxu0 0.0
      %758 = vmatprep.subr.mxu0 0.0
      %759 = vmatpush1.msra.mxu0 0.0
      %760 = vmatprep.subr.mxu0 0.0
      %761 = vmatpush1.msra.mxu0 0.0
      %762 = vmatprep.subr.mxu0 0.0
      %763 = vmatpush1.msra.mxu0 0.0
      %764 = vmatprep.subr.mxu0 0.0
      %765 = vmatpush1.msra.mxu0 0.0
      %766 = vmatprep.subr.mxu0 0.0
      %767 = vmatpush1.msra.mxu0 0.0
      %768 = vmatprep.subr.mxu0 0.0
      %769 = vmatpush1.msra.mxu0 0.0
      %770 = vmatprep.subr.mxu0 0.0
      %771 = vmatpush1.msra.mxu0 0.0
      %772 = vmatprep.subr.mxu0 0.0
      %773 = vmatpush1.msra.mxu0 0.0
      %774 = vmatprep.subr.mxu0 0.0
      %775 = vmatpush1.msra.mxu0 0.0
      %776 = vmatprep.subr.mxu0 0.0
      %777 = vmatpush1.msra.mxu0 0.0
      %778 = vmatprep.subr.mxu0 0.0
      %779 = vmatpush1.msra.mxu0 0.0
      %780 = vmatprep.subr.mxu0 0.0
      %781 = vmatpush1.msra.mxu0 0.0
      %782 = vmatprep.subr.mxu0 0.0
      %783 = vmatpush1.msra.mxu0 0.0
      %784 = vmatprep.subr.mxu0 0.0
      %785 = vmatpush1.msra.mxu0 0.0
      %786 = vmatprep.subr.mxu0 0.0
      %787 = vmatpush1.msra.mxu0 0.0
      %788 = vmatprep.subr.mxu0 0.0
      %789 = vmatpush1.msra.mxu0 0.0
      %790 = vmatprep.subr.mxu0 0.0
      %791 = vmatpush1.msra.mxu0 0.0
      %792 = vmatprep.mubr.f32.mxu0 0.0
      %793 = vmatmul.mubr.f32.gmra.mrb[0].mxu0 %v681
      %v794 = vpop.f32.mrb[0].mxu0
      %v795 = vadd.f32 %v602, %v794
      %v796 = vpop.f32.mrb[0].mxu0
      %797 = vmatprep.mubr.f32.mxu0 0.0
      %798 = vmatmul.mubr.f32.gmra.mrb[0].mxu0 %v684
      %v799 = vpop.f32.mrb[0].mxu0
      %v800 = vadd.f32 %v607, %v799
      %v801 = vpop.f32.mrb[0].mxu0
      %802 = vmatprep.mubr.f32.mxu0 0.0
      %803 = vmatmul.mubr.f32.gmra.mrb[0].mxu0 %v687
      %v804 = vpop.f32.mrb[0].mxu0
      %v805 = vadd.f32 %v612, %v804
      %v806 = vpop.f32.mrb[0].mxu0
      %807 = vmatprep.mubr.f32.mxu0 0.0
      %808 = vmatmul.mubr.f32.gmra.mrb[0].mxu0 %v690
      %v809 = vpop.f32.mrb[0].mxu0
      %v810 = vadd.f32 %v617, %v809
      %v811 = vpop.f32.mrb[0].mxu0
      %812 = vmatprep.mubr.f32.mxu0 0.0
      %813 = vmatmul.mubr.f32.gmra.mrb[0].mxu0 %v693
      %v814 = vpop.f32.mrb[0].mxu0
      %v815 = vadd.f32 %v622, %v814
      %v816 = vpop.f32.mrb[0].mxu0
      %817 = vmatprep.mubr.f32.mxu0 0.0
      %818 = vmatmul.mubr.f32.gmra.mrb[0].mxu0 %v696
      %v819 = vpop.f32.mrb[0].mxu0
      %v820 = vadd.f32 %v627, %v819
      %v821 = vpop.f32.mrb[0].mxu0
      %822 = vmatprep.mubr.f32.mxu0 0.0
      %823 = vmatmul.mubr.f32.gmra.mrb[0].mxu0 %v699
      %v824 = vpop.f32.mrb[0].mxu0
      %v825 = vadd.f32 %v632, %v824
      %v826 = vpop.f32.mrb[0].mxu0
      %827 = vmatprep.mubr.f32.mxu0 0.0
      %828 = vmatmul.mubr.f32.gmra.mrb[0].mxu0 %v702
      %v829 = vpop.f32.mrb[0].mxu0
      %v830 = vadd.f32 %v637, %v829
      %v831 = vpop.f32.mrb[0].mxu0
      %832 = vmatprep.mubr.f32.mxu0 0.0
      %833 = vmatmul.mubr.f32.gmra.mrb[0].mxu0 %v705
      %v834 = vpop.f32.mrb[0].mxu0
      %v835 = vadd.f32 %v642, %v834
      %v836 = vpop.f32.mrb[0].mxu0
      %837 = vmatprep.mubr.f32.mxu0 0.0
      %838 = vmatmul.mubr.f32.gmra.mrb[0].mxu0 %v708
      %v839 = vpop.f32.mrb[0].mxu0
      %v840 = vadd.f32 %v647, %v839
      %v841 = vpop.f32.mrb[0].mxu0
      %842 = vmatprep.mubr.f32.mxu0 0.0
      %843 = vmatmul.mubr.f32.gmra.mrb[0].mxu0 %v711
      %v844 = vpop.f32.mrb[0].mxu0
      %v845 = vadd.f32 %v652, %v844
      %v846 = vpop.f32.mrb[0].mxu0
      %847 = vmatprep.mubr.f32.mxu0 0.0
      %848 = vmatmul.mubr.f32.gmra.mrb[0].mxu0 %v714
      %v849 = vpop.f32.mrb[0].mxu0
      %v850 = vadd.f32 %v657, %v849
      %v851 = vpop.f32.mrb[0].mxu0
      %852 = vmatprep.mubr.f32.mxu0 0.0
      %853 = vmatmul.mubr.f32.gmra.mrb[0].mxu0 %v717
      %v854 = vpop.f32.mrb[0].mxu0
      %v855 = vadd.f32 %v662, %v854
      %v856 = vpop.f32.mrb[0].mxu0
      %857 = vmatprep.mubr.f32.mxu0 0.0
      %858 = vmatmul.mubr.f32.gmra.mrb[0].mxu0 %v720
      %v859 = vpop.f32.mrb[0].mxu0
      %v860 = vadd.f32 %v667, %v859
      %v861 = vpop.f32.mrb[0].mxu0
      %862 = vmatprep.mubr.f32.mxu0 0.0
      %863 = vmatmul.mubr.f32.gmra.mrb[0].mxu0 %v723
      %v864 = vpop.f32.mrb[0].mxu0
      %v865 = vadd.f32 %v672, %v864
      %v866 = vpop.f32.mrb[0].mxu0
      %867 = vmatprep.mubr.f32.mxu0 0.0
      %868 = vmatmul.mubr.f32.gmra.mrb[0].mxu0 %v726
      %v869 = vpop.f32.mrb[0].mxu0
      %v870 = vadd.f32 %v677, %v869
      %v871 = vpop.f32.mrb[0].mxu0
      %872 = vdwg.mxu0
      %v873 = vld [vmem:[%s4] sm:$0x1]
      %v875 = vlaneseq
      %v876 = vshrl.u32 %v875, 7
      %v877 = vsub.s32 0, %v876
      %v878 = vrot.slane %v873, %v877
      %v880 = vadd.f32 %v795, %v878
      %v881 = vadd.f32 %v800, %v878
      %v882 = vadd.f32 %v805, %v878
      %v883 = vadd.f32 %v810, %v878
      %v884 = vadd.f32 %v815, %v878
      %v885 = vadd.f32 %v820, %v878
      %v886 = vadd.f32 %v825, %v878
      %v887 = vadd.f32 %v830, %v878
      %v888 = vadd.f32 %v835, %v878
      %v889 = vadd.f32 %v840, %v878
      %v890 = vadd.f32 %v845, %v878
      %v891 = vadd.f32 %v850, %v878
      %v892 = vadd.f32 %v855, %v878
      %v893 = vadd.f32 %v860, %v878
      %v894 = vadd.f32 %v865, %v878
      %v895 = vadd.f32 %v870, %v878
      %v896 = vmax.f32 %v880, 0.0
      %v897 = vmax.f32 %v881, 0.0
      %v898 = vmax.f32 %v882, 0.0
      %v899 = vmax.f32 %v883, 0.0
      %v900 = vmax.f32 %v884, 0.0
      %v901 = vmax.f32 %v885, 0.0
      %v902 = vmax.f32 %v886, 0.0
      %v903 = vmax.f32 %v887, 0.0
      %v904 = vmax.f32 %v888, 0.0
      %v905 = vmax.f32 %v889, 0.0
      %v906 = vmax.f32 %v890, 0.0
      %v907 = vmax.f32 %v891, 0.0
      %v908 = vmax.f32 %v892, 0.0
      %v909 = vmax.f32 %v893, 0.0
      %v910 = vmax.f32 %v894, 0.0
      %v911 = vmax.f32 %v895, 0.0
      %v912 = vld [vmem:[%s6] sm:$0x1]
      %v914 = vlaneseq
      %v915 = vshrl.u32 %v914, 7
      %v916 = vsub.s32 0, %v915
      %v917 = vrot.slane %v912, %v916
      %919 = vmatprep.subr.mxu0 0.0
      %920 = vmatpush1.msra.mxu0 %v406
      %921 = vmatprep.subr.mxu0 0.0
      %922 = vmatpush1.msra.mxu0 %v407
      %923 = vmatprep.subr.mxu0 0.0
      %924 = vmatpush1.msra.mxu0 %v408
      %925 = vmatprep.subr.mxu0 0.0
      %926 = vmatpush1.msra.mxu0 %v409
      %927 = vmatprep.subr.mxu0 0.0
      %928 = vmatpush1.msra.mxu0 %v410
      %929 = vmatprep.subr.mxu0 0.0
      %930 = vmatpush1.msra.mxu0 %v411
      %931 = vmatprep.subr.mxu0 0.0
      %932 = vmatpush1.msra.mxu0 %v412
      %933 = vmatprep.subr.mxu0 0.0
      %934 = vmatpush1.msra.mxu0 %v413
      %935 = vmatprep.subr.mxu0 0.0
      %936 = vmatpush1.msra.mxu0 %v414
      %937 = vmatprep.subr.mxu0 0.0
      %938 = vmatpush1.msra.mxu0 %v415
      %939 = vmatprep.subr.mxu0 0.0
      %940 = vmatpush1.msra.mxu0 %v416
      %941 = vmatprep.subr.mxu0 0.0
      %942 = vmatpush1.msra.mxu0 %v417
      %943 = vmatprep.subr.mxu0 0.0
      %944 = vmatpush1.msra.mxu0 %v418
      %945 = vmatprep.subr.mxu0 0.0
      %946 = vmatpush1.msra.mxu0 %v419
      %947 = vmatprep.subr.mxu0 0.0
      %948 = vmatpush1.msra.mxu0 %v420
      %949 = vmatprep.subr.mxu0 0.0
      %950 = vmatpush1.msra.mxu0 %v421
      %951 = vmatprep.subr.mxu0 0.0
      %952 = vmatpush1.msra.mxu0 0.0
      %953 = vmatprep.subr.mxu0 0.0
      %954 = vmatpush1.msra.mxu0 0.0
      %955 = vmatprep.subr.mxu0 0.0
      %956 = vmatpush1.msra.mxu0 0.0
      %957 = vmatprep.subr.mxu0 0.0
      %958 = vmatpush1.msra.mxu0 0.0
      %959 = vmatprep.subr.mxu0 0.0
      %960 = vmatpush1.msra.mxu0 0.0
      %961 = vmatprep.subr.mxu0 0.0
      %962 = vmatpush1.msra.mxu0 0.0
      %963 = vmatprep.subr.mxu0 0.0
      %964 = vmatpush1.msra.mxu0 0.0
      %965 = vmatprep.subr.mxu0 0.0
      %966 = vmatpush1.msra.mxu0 0.0
      %967 = vmatprep.subr.mxu0 0.0
      %968 = vmatpush1.msra.mxu0 0.0
      %969 = vmatprep.subr.mxu0 0.0
      %970 = vmatpush1.msra.mxu0 0.0
      %971 = vmatprep.subr.mxu0 0.0
      %972 = vmatpush1.msra.mxu0 0.0
      %973 = vmatprep.subr.mxu0 0.0
      %974 = vmatpush1.msra.mxu0 0.0
      %975 = vmatprep.subr.mxu0 0.0
      %976 = vmatpush1.msra.mxu0 0.0
      %977 = vmatprep.subr.mxu0 0.0
      %978 = vmatpush1.msra.mxu0 0.0
      %979 = vmatprep.subr.mxu0 0.0
      %980 = vmatpush1.msra.mxu0 0.0
      %981 = vmatprep.subr.mxu0 0.0
      %982 = vmatpush1.msra.mxu0 0.0
      %983 = vmatprep.mubr.f32.mxu0 0.0
      %984 = vmatmul.mubr.f32.gmra.mrb[0].mxu0 %v896
      %v985 = vpop.f32.mrb[0].mxu0
      %v986 = vadd.f32 %v917, %v985
      %v987 = vpop.f32.mrb[0].mxu0
      %988 = vmatprep.mubr.f32.mxu0 0.0
      %989 = vmatmul.mubr.f32.gmra.mrb[0].mxu0 %v897
      %v990 = vpop.f32.mrb[0].mxu0
      %v991 = vadd.f32 %v917, %v990
      %v992 = vpop.f32.mrb[0].mxu0
      %993 = vmatprep.mubr.f32.mxu0 0.0
      %994 = vmatmul.mubr.f32.gmra.mrb[0].mxu0 %v898
      %v995 = vpop.f32.mrb[0].mxu0
      %v996 = vadd.f32 %v917, %v995
      %v997 = vpop.f32.mrb[0].mxu0
      %998 = vmatprep.mubr.f32.mxu0 0.0
      %999 = vmatmul.mubr.f32.gmra.mrb[0].mxu0 %v899
      %v1000 = vpop.f32.mrb[0].mxu0
      %v1001 = vadd.f32 %v917, %v1000
      %v1002 = vpop.f32.mrb[0].mxu0
      %1003 = vmatprep.mubr.f32.mxu0 0.0
      %1004 = vmatmul.mubr.f32.gmra.mrb[0].mxu0 %v900
      %v1005 = vpop.f32.mrb[0].mxu0
      %v1006 = vadd.f32 %v917, %v1005
      %v1007 = vpop.f32.mrb[0].mxu0
      %1008 = vmatprep.mubr.f32.mxu0 0.0
      %1009 = vmatmul.mubr.f32.gmra.mrb[0].mxu0 %v901
      %v1010 = vpop.f32.mrb[0].mxu0
      %v1011 = vadd.f32 %v917, %v1010
      %v1012 = vpop.f32.mrb[0].mxu0
      %1013 = vmatprep.mubr.f32.mxu0 0.0
      %1014 = vmatmul.mubr.f32.gmra.mrb[0].mxu0 %v902
      %v1015 = vpop.f32.mrb[0].mxu0
      %v1016 = vadd.f32 %v917, %v1015
      %v1017 = vpop.f32.mrb[0].mxu0
      %1018 = vmatprep.mubr.f32.mxu0 0.0
      %1019 = vmatmul.mubr.f32.gmra.mrb[0].mxu0 %v903
      %v1020 = vpop.f32.mrb[0].mxu0
      %v1021 = vadd.f32 %v917, %v1020
      %v1022 = vpop.f32.mrb[0].mxu0
      %1023 = vmatprep.mubr.f32.mxu0 0.0
      %1024 = vmatmul.mubr.f32.gmra.mrb[0].mxu0 %v904
      %v1025 = vpop.f32.mrb[0].mxu0
      %v1026 = vadd.f32 %v917, %v1025
      %v1027 = vpop.f32.mrb[0].mxu0
      %1028 = vmatprep.mubr.f32.mxu0 0.0
      %1029 = vmatmul.mubr.f32.gmra.mrb[0].mxu0 %v905
      %v1030 = vpop.f32.mrb[0].mxu0
      %v1031 = vadd.f32 %v917, %v1030
      %v1032 = vpop.f32.mrb[0].mxu0
      %1033 = vmatprep.mubr.f32.mxu0 0.0
      %1034 = vmatmul.mubr.f32.gmra.mrb[0].mxu0 %v906
      %v1035 = vpop.f32.mrb[0].mxu0
      %v1036 = vadd.f32 %v917, %v1035
      %v1037 = vpop.f32.mrb[0].mxu0
      %1038 = vmatprep.mubr.f32.mxu0 0.0
      %1039 = vmatmul.mubr.f32.gmra.mrb[0].mxu0 %v907
      %v1040 = vpop.f32.mrb[0].mxu0
      %v1041 = vadd.f32 %v917, %v1040
      %v1042 = vpop.f32.mrb[0].mxu0
      %1043 = vmatprep.mubr.f32.mxu0 0.0
      %1044 = vmatmul.mubr.f32.gmra.mrb[0].mxu0 %v908
      %v1045 = vpop.f32.mrb[0].mxu0
      %v1046 = vadd.f32 %v917, %v1045
      %v1047 = vpop.f32.mrb[0].mxu0
      %1048 = vmatprep.mubr.f32.mxu0 0.0
      %1049 = vmatmul.mubr.f32.gmra.mrb[0].mxu0 %v909
      %v1050 = vpop.f32.mrb[0].mxu0
      %v1051 = vadd.f32 %v917, %v1050
      %v1052 = vpop.f32.mrb[0].mxu0
      %1053 = vmatprep.mubr.f32.mxu0 0.0
      %1054 = vmatmul.mubr.f32.gmra.mrb[0].mxu0 %v910
      %v1055 = vpop.f32.mrb[0].mxu0
      %v1056 = vadd.f32 %v917, %v1055
      %v1057 = vpop.f32.mrb[0].mxu0
      %1058 = vmatprep.mubr.f32.mxu0 0.0
      %1059 = vmatmul.mubr.f32.gmra.mrb[0].mxu0 %v911
      %v1060 = vpop.f32.mrb[0].mxu0
      %v1061 = vadd.f32 %v917, %v1060
      %v1062 = vpop.f32.mrb[0].mxu0
      %1063 = vdwg.mxu0
      %v1064 = vmax.f32 %v986, 0.0
      %v1065 = vmax.f32 %v991, 0.0
      %v1066 = vmax.f32 %v996, 0.0
      %v1067 = vmax.f32 %v1001, 0.0
      %v1068 = vmax.f32 %v1006, 0.0
      %v1069 = vmax.f32 %v1011, 0.0
      %v1070 = vmax.f32 %v1016, 0.0
      %v1071 = vmax.f32 %v1021, 0.0
      %v1072 = vmax.f32 %v1026, 0.0
      %v1073 = vmax.f32 %v1031, 0.0
      %v1074 = vmax.f32 %v1036, 0.0
      %v1075 = vmax.f32 %v1041, 0.0
      %v1076 = vmax.f32 %v1046, 0.0
      %v1077 = vmax.f32 %v1051, 0.0
      %v1078 = vmax.f32 %v1056, 0.0
      %v1079 = vmax.f32 %v1061, 0.0
      %v1080 = vld [vmem:[%s8] sm:$0x1]
      %v1082 = vlaneseq
      %v1083 = vshrl.u32 %v1082, 7
      %v1084 = vsub.s32 0, %v1083
      %v1085 = vrot.slane %v1080, %v1084
      %1087 = vmatprep.subr.mxu0 0.0
      %1088 = vmatpush1.msra.mxu0 %v438
      %1089 = vmatprep.subr.mxu0 0.0
      %1090 = vmatpush1.msra.mxu0 %v439
      %1091 = vmatprep.subr.mxu0 0.0
      %1092 = vmatpush1.msra.mxu0 %v440
      %1093 = vmatprep.subr.mxu0 0.0
      %1094 = vmatpush1.msra.mxu0 %v441
      %1095 = vmatprep.subr.mxu0 0.0
      %1096 = vmatpush1.msra.mxu0 %v442
      %1097 = vmatprep.subr.mxu0 0.0
      %1098 = vmatpush1.msra.mxu0 %v443
      %1099 = vmatprep.subr.mxu0 0.0
      %1100 = vmatpush1.msra.mxu0 %v444
      %1101 = vmatprep.subr.mxu0 0.0
      %1102 = vmatpush1.msra.mxu0 %v445
      %1103 = vmatprep.subr.mxu0 0.0
      %1104 = vmatpush1.msra.mxu0 %v446
      %1105 = vmatprep.subr.mxu0 0.0
      %1106 = vmatpush1.msra.mxu0 %v447
      %1107 = vmatprep.subr.mxu0 0.0
      %1108 = vmatpush1.msra.mxu0 %v448
      %1109 = vmatprep.subr.mxu0 0.0
      %1110 = vmatpush1.msra.mxu0 %v449
      %1111 = vmatprep.subr.mxu0 0.0
      %1112 = vmatpush1.msra.mxu0 %v450
      %1113 = vmatprep.subr.mxu0 0.0
      %1114 = vmatpush1.msra.mxu0 %v451
      %1115 = vmatprep.subr.mxu0 0.0
      %1116 = vmatpush1.msra.mxu0 %v452
      %1117 = vmatprep.subr.mxu0 0.0
      %1118 = vmatpush1.msra.mxu0 %v453
      %1119 = vmatprep.subr.mxu0 0.0
      %1120 = vmatpush1.msra.mxu0 0.0
      %1121 = vmatprep.subr.mxu0 0.0
      %1122 = vmatpush1.msra.mxu0 0.0
      %1123 = vmatprep.subr.mxu0 0.0
      %1124 = vmatpush1.msra.mxu0 0.0
      %1125 = vmatprep.subr.mxu0 0.0
      %1126 = vmatpush1.msra.mxu0 0.0
      %1127 = vmatprep.subr.mxu0 0.0
      %1128 = vmatpush1.msra.mxu0 0.0
      %1129 = vmatprep.subr.mxu0 0.0
      %1130 = vmatpush1.msra.mxu0 0.0
      %1131 = vmatprep.subr.mxu0 0.0
      %1132 = vmatpush1.msra.mxu0 0.0
      %1133 = vmatprep.subr.mxu0 0.0
      %1134 = vmatpush1.msra.mxu0 0.0
      %1135 = vmatprep.subr.mxu0 0.0
      %1136 = vmatpush1.msra.mxu0 0.0
      %1137 = vmatprep.subr.mxu0 0.0
      %1138 = vmatpush1.msra.mxu0 0.0
      %1139 = vmatprep.subr.mxu0 0.0
      %1140 = vmatpush1.msra.mxu0 0.0
      %1141 = vmatprep.subr.mxu0 0.0
      %1142 = vmatpush1.msra.mxu0 0.0
      %1143 = vmatprep.subr.mxu0 0.0
      %1144 = vmatpush1.msra.mxu0 0.0
      %1145 = vmatprep.subr.mxu0 0.0
      %1146 = vmatpush1.msra.mxu0 0.0
      %1147 = vmatprep.subr.mxu0 0.0
      %1148 = vmatpush1.msra.mxu0 0.0
      %1149 = vmatprep.subr.mxu0 0.0
      %1150 = vmatpush1.msra.mxu0 0.0
      %1151 = vmatprep.mubr.f32.mxu0 0.0
      %1152 = vmatmul.mubr.f32.gmra.mrb[0].mxu0 %v1064
      %v1153 = vpop.f32.mrb[0].mxu0
      %v1154 = vadd.f32 %v1085, %v1153
      %v1155 = vpop.f32.mrb[0].mxu0
      %1156 = vmatprep.mubr.f32.mxu0 0.0
      %1157 = vmatmul.mubr.f32.gmra.mrb[0].mxu0 %v1065
      %v1158 = vpop.f32.mrb[0].mxu0
      %v1159 = vadd.f32 %v1085, %v1158
      %v1160 = vpop.f32.mrb[0].mxu0
      %1161 = vmatprep.mubr.f32.mxu0 0.0
      %1162 = vmatmul.mubr.f32.gmra.mrb[0].mxu0 %v1066
      %v1163 = vpop.f32.mrb[0].mxu0
      %v1164 = vadd.f32 %v1085, %v1163
      %v1165 = vpop.f32.mrb[0].mxu0
      %1166 = vmatprep.mubr.f32.mxu0 0.0
      %1167 = vmatmul.mubr.f32.gmra.mrb[0].mxu0 %v1067
      %v1168 = vpop.f32.mrb[0].mxu0
      %v1169 = vadd.f32 %v1085, %v1168
      %v1170 = vpop.f32.mrb[0].mxu0
      %1171 = vmatprep.mubr.f32.mxu0 0.0
      %1172 = vmatmul.mubr.f32.gmra.mrb[0].mxu0 %v1068
      %v1173 = vpop.f32.mrb[0].mxu0
      %v1174 = vadd.f32 %v1085, %v1173
      %v1175 = vpop.f32.mrb[0].mxu0
      %1176 = vmatprep.mubr.f32.mxu0 0.0
      %1177 = vmatmul.mubr.f32.gmra.mrb[0].mxu0 %v1069
      %v1178 = vpop.f32.mrb[0].mxu0
      %v1179 = vadd.f32 %v1085, %v1178
      %v1180 = vpop.f32.mrb[0].mxu0
      %1181 = vmatprep.mubr.f32.mxu0 0.0
      %1182 = vmatmul.mubr.f32.gmra.mrb[0].mxu0 %v1070
      %v1183 = vpop.f32.mrb[0].mxu0
      %v1184 = vadd.f32 %v1085, %v1183
      %v1185 = vpop.f32.mrb[0].mxu0
      %1186 = vmatprep.mubr.f32.mxu0 0.0
      %1187 = vmatmul.mubr.f32.gmra.mrb[0].mxu0 %v1071
      %v1188 = vpop.f32.mrb[0].mxu0
      %v1189 = vadd.f32 %v1085, %v1188
      %v1190 = vpop.f32.mrb[0].mxu0
      %1191 = vmatprep.mubr.f32.mxu0 0.0
      %1192 = vmatmul.mubr.f32.gmra.mrb[0].mxu0 %v1072
      %v1193 = vpop.f32.mrb[0].mxu0
      %v1194 = vadd.f32 %v1085, %v1193
      %v1195 = vpop.f32.mrb[0].mxu0
      %1196 = vmatprep.mubr.f32.mxu0 0.0
      %1197 = vmatmul.mubr.f32.gmra.mrb[0].mxu0 %v1073
      %v1198 = vpop.f32.mrb[0].mxu0
      %v1199 = vadd.f32 %v1085, %v1198
      %v1200 = vpop.f32.mrb[0].mxu0
      %1201 = vmatprep.mubr.f32.mxu0 0.0
      %1202 = vmatmul.mubr.f32.gmra.mrb[0].mxu0 %v1074
      %v1203 = vpop.f32.mrb[0].mxu0
      %v1204 = vadd.f32 %v1085, %v1203
      %v1205 = vpop.f32.mrb[0].mxu0
      %1206 = vmatprep.mubr.f32.mxu0 0.0
      %1207 = vmatmul.mubr.f32.gmra.mrb[0].mxu0 %v1075
      %v1208 = vpop.f32.mrb[0].mxu0
      %v1209 = vadd.f32 %v1085, %v1208
      %v1210 = vpop.f32.mrb[0].mxu0
      %1211 = vmatprep.mubr.f32.mxu0 0.0
      %1212 = vmatmul.mubr.f32.gmra.mrb[0].mxu0 %v1076
      %v1213 = vpop.f32.mrb[0].mxu0
      %v1214 = vadd.f32 %v1085, %v1213
      %v1215 = vpop.f32.mrb[0].mxu0
      %1216 = vmatprep.mubr.f32.mxu0 0.0
      %1217 = vmatmul.mubr.f32.gmra.mrb[0].mxu0 %v1077
      %v1218 = vpop.f32.mrb[0].mxu0
      %v1219 = vadd.f32 %v1085, %v1218
      %v1220 = vpop.f32.mrb[0].mxu0
      %1221 = vmatprep.mubr.f32.mxu0 0.0
      %1222 = vmatmul.mubr.f32.gmra.mrb[0].mxu0 %v1078
      %v1223 = vpop.f32.mrb[0].mxu0
      %v1224 = vadd.f32 %v1085, %v1223
      %v1225 = vpop.f32.mrb[0].mxu0
      %1226 = vmatprep.mubr.f32.mxu0 0.0
      %1227 = vmatmul.mubr.f32.gmra.mrb[0].mxu0 %v1079
      %v1228 = vpop.f32.mrb[0].mxu0
      %v1229 = vadd.f32 %v1085, %v1228
      %v1230 = vpop.f32.mrb[0].mxu0
      %1231 = vdwg.mxu0
      %1232 = vst [vmem:[%s356] sm:$0xff] %v1154
      %1233 = vst [vmem:[%s356 + $0x8] sm:$0xff] %v1159
      %1234 = vst [vmem:[%s356 + $0x10] sm:$0xff] %v1164
      %1235 = vst [vmem:[%s356 + $0x18] sm:$0xff] %v1169
      %1236 = vst [vmem:[%s356 + $0x20] sm:$0xff] %v1174
      %1237 = vst [vmem:[%s356 + $0x28] sm:$0xff] %v1179
      %1238 = vst [vmem:[%s356 + $0x30] sm:$0xff] %v1184
      %1239 = vst [vmem:[%s356 + $0x38] sm:$0xff] %v1189
      %1240 = vst [vmem:[%s356 + $0x40] sm:$0xff] %v1194
      %1241 = vst [vmem:[%s356 + $0x48] sm:$0xff] %v1199
      %1242 = vst [vmem:[%s356 + $0x50] sm:$0xff] %v1204
      %1243 = vst [vmem:[%s356 + $0x58] sm:$0xff] %v1209
      %1244 = vst [vmem:[%s356 + $0x60] sm:$0xff] %v1214
      %1245 = vst [vmem:[%s356 + $0x68] sm:$0xff] %v1219
      %1246 = vst [vmem:[%s356 + $0x70] sm:$0xff] %v1224
      %1247 = vst [vmem:[%s356 + $0x78] sm:$0xff] %v1229
      %s1248 = smul.u32 16, %s20
      %p1249 = scmp.lt.s32.totalorder %s1248, 31
      %s1250 = scalar_select %p1249, %s1248, 31
      %s1251 = smul.addr %s1250, 8
      %s1252 = scalar_lea.vmem %s9, %s1251
      // Predicated region
      $region57: #{inverse_model.1} parent=55 // pred_check
        %p1253 = pneg %p237
      $region58: #{inverse_model.1} parent=55 // pred_check_branch
        %1255 = sbr.rel (%p1253) target = $region60
      $region59: #{inverse_model.1} parent=55 // pred_region
        %s1256 = smul.u32 16, %s20
      $region60: #{inverse_model.1} parent=55 // pred_fallthru
        _
    $region56: #{inverse_model.1} parent=5 // pred_fallthru
      _
    %p1257 = scmp.le.s32.totalorder 2, %s15
    // Predicated region
    $region61: #{inverse_model.1} parent=5 // pred_check
      %p1258 = pneg %p1257
    $region62: #{inverse_model.1} parent=5 // pred_check_branch
      %1260 = sbr.rel (%p1258) target = $region64
    $region63: #{inverse_model.1} parent=5 // pred_region
      %s1261 = ssub.s32 %s15, 2
      // Predicated region
      $region65: #{inverse_model.1} parent=63 // pred_check
        %p1262 = pneg %p243
      $region66: #{inverse_model.1} parent=63 // pred_check_branch
        %1264 = sbr.rel (%p1262) target = $region68
      $region67: #{inverse_model.1} parent=63 // pred_region
        %s1265 = smul.u32 16, %s21
        %p1266 = scmp.lt.s32.totalorder %s1265, 31
        %s1267 = scalar_select %p1266, %s1265, 31
        %s1268 = smul.addr %s1267, 8
        %s1269 = scalar_lea.vmem %s9, %s1268
      $region68: #{inverse_model.1} parent=63 // pred_fallthru
        _
    $region64: #{inverse_model.1} parent=5 // pred_fallthru
      _
  $region6: #{inverse_model.1} parent=0 // loop_footer
    %s19 = sadd.s32 1, %s15
  $region7: #{inverse_model.1} parent=0 // loop_footer_branch
    %14 = sbr.rel target = $region3
  $region8: #{inverse_model.1} parent=0 // loop_exit
    _

</llo_original>
